<compile_context>
chip_gen: v7x
topology: tpu7x:2x2x1
jax: 0.10.0
libtpu: 0.0.40
codegen_flags: <defaults>
</compile_context>

<pallas_src>
import functools

import jax
import jax.numpy as jnp
from jax.experimental import pallas as pl
from jax.experimental.pallas import tpu as pltpu

_LANE = 128
_SUBLANE = 8


def _weighted_ce_kernel(logits_ref, labels_ref, w_ref, num_ref, den_ref, *,
                        ignore_index, num_classes):
    # logits_ref: (1, C, TS, 128) block, labels_ref: (1, 1, TS, 128) int32,
    # w_ref: (C,) f32 in SMEM, outputs: (1, 1, 8, 128) f32 partial sums.
    lbl = labels_ref[0, 0]                                    # (TS, 128) int32

    # Pass 1: running max over classes (one class slice live at a time).
    m = logits_ref[0, 0].astype(jnp.float32)                  # (TS, 128)
    for c in range(1, num_classes):
        m = jnp.maximum(m, logits_ref[0, c].astype(jnp.float32))

    # Pass 2 (fused): exp-sum + gather of label logit and class weight.
    # Class slices are re-loaded from VMEM (vld is cheap) rather than kept
    # live across both passes, keeping vreg pressure low.
    s = jnp.zeros_like(m)
    logit_y = jnp.zeros_like(m)
    w_y = jnp.zeros_like(m)
    for c in range(num_classes):
        r = logits_ref[0, c].astype(jnp.float32)
        s = s + jnp.exp(r - m)
        sel = lbl == c
        logit_y = jnp.where(sel, r, logit_y)
        w_y = jnp.where(sel, w_ref[c], w_y)                   # scalar from SMEM

    ce = (m + jnp.log(s)) - logit_y                           # per-pixel CE
    valid = lbl != ignore_index
    num = jnp.where(valid, w_y * ce, 0.0)                     # w[y]*CE, 0 if ignored
    den = jnp.where(valid, w_y, 0.0)                          # w[y],    0 if ignored

    # Per-tile partial reduction to a single dense (8,128) vreg each (the
    # reshape only regroups whole (8,128) vregs -> no data movement).
    ts = num.shape[0]
    num_ref[0, 0] = num.reshape(ts // _SUBLANE, _SUBLANE, _LANE).sum(axis=0)
    den_ref[0, 0] = den.reshape(ts // _SUBLANE, _SUBLANE, _LANE).sum(axis=0)


def _round_up(x, m):
    return (x + m - 1) // m * m


def _vmem_capacity_bytes():
    try:
        return int(pltpu.get_tpu_info().vmem_capacity_bytes)
    except Exception:
        return 64 * 1024 * 1024  # conservative (v7x physical VMEM)


def _pick_tile_sublanes(chunks, num_classes, itemsize, vmem_cap):
    """Sublane-chunks per pixel tile: a multiple of 8, sized so the
    double-buffered logits block stays a few MiB on every generation."""
    target = max(512 * 1024, min(vmem_cap // 32, 8 * 1024 * 1024))
    bytes_per_chunk = num_classes * _LANE * itemsize
    cap = max(_SUBLANE, (target // bytes_per_chunk) // _SUBLANE * _SUBLANE)
    if chunks <= cap:
        return _round_up(chunks, _SUBLANE)
    # Prefer the largest divisor of `chunks` (no padding) below the cap.
    for ts in range(cap, _SUBLANE - 1, -_SUBLANE):
        if chunks % ts == 0:
            return ts
    return cap  # wrapper pads the pixel axis up to a multiple of `cap`


def focal_loss_2d(preds, labels, *, alpha=0.5, gamma=2.0, weight=None,
                  ignore_index=255, tile_sublanes=None):
    """FocalLoss2d.forward: focal modulation of the mean weighted CE."""
    n, c, h, w = preds.shape
    hw = h * w
    itemsize = jnp.dtype(preds.dtype).itemsize
    chunks = pl.cdiv(hw, _LANE)
    vmem_cap = _vmem_capacity_bytes()
    if tile_sublanes is None:
        tile_sublanes = _pick_tile_sublanes(chunks, c, itemsize, vmem_cap)
    assert tile_sublanes % _SUBLANE == 0
    num_tiles = pl.cdiv(chunks, tile_sublanes)
    chunks_pad = num_tiles * tile_sublanes
    hw_pad = chunks_pad * _LANE

    logits = preds.reshape(n, c, hw)                  # free view of NCHW
    lbl = labels.reshape(n, 1, hw).astype(jnp.int32)
    if hw_pad != hw:
        # TODO(synk): padding copies logits once in HBM; only hit when H*W is
        # not already a multiple of the 1024-pixel tile granule.
        logits = jnp.pad(logits, ((0, 0), (0, 0), (0, hw_pad - hw)))
        lbl = jnp.pad(lbl, ((0, 0), (0, 0), (0, hw_pad - hw)),
                      constant_values=ignore_index)
    logits = logits.reshape(n, c, chunks_pad, _LANE)  # pixels sublane+lane dense
    lbl = lbl.reshape(n, 1, chunks_pad, _LANE)

    if weight is None:
        wts = jnp.ones((c,), jnp.float32)             # matches weight=None mean
    else:
        wts = jnp.asarray(weight, jnp.float32).reshape(c)

    kernel = functools.partial(_weighted_ce_kernel,
                               ignore_index=ignore_index, num_classes=c)

    out_block = pl.BlockSpec((1, 1, _SUBLANE, _LANE), lambda i, j: (i, j, 0, 0))
    out_sd = jax.ShapeDtypeStruct((n, num_tiles, _SUBLANE, _LANE), jnp.float32)

    # VMEM budget: double-buffered logits + labels tiles, tiny partial outputs.
    logits_blk = c * tile_sublanes * _LANE * itemsize
    labels_blk = tile_sublanes * _LANE * 4
    vmem_needed = 2 * (logits_blk + labels_blk) + 4 * (_SUBLANE * _LANE * 4)
    vmem_limit = int(min(vmem_cap // 2,
                         max(32 * 1024 * 1024, 2 * vmem_needed)))

    num, den = pl.pallas_call(
        kernel,
        out_shape=(out_sd, out_sd),
        grid_spec=pltpu.PrefetchScalarGridSpec(
            num_scalar_prefetch=0,
            grid=(n, num_tiles),
            in_specs=[
                pl.BlockSpec((1, c, tile_sublanes, _LANE),
                             lambda i, j: (i, 0, j, 0)),          # logits
                pl.BlockSpec((1, 1, tile_sublanes, _LANE),
                             lambda i, j: (i, 0, j, 0)),          # labels
                pl.BlockSpec(memory_space=pltpu.MemorySpace.SMEM),  # weights
            ],
            out_specs=(out_block, out_block),
        ),
        compiler_params=pltpu.CompilerParams(
            dimension_semantics=("parallel", "parallel"),
            vmem_limit_bytes=vmem_limit),
    )(logits, lbl, wts)

    # PyTorch CrossEntropyLoss(weight, ignore_index, reduction='mean'):
    #   sum_i w[y_i]*CE_i / sum_i w[y_i] over non-ignored pixels.
    # (NaN when every pixel is ignored -- same as PyTorch.)
    mean_ce = jnp.sum(num) / jnp.sum(den)

    # FocalLoss2d.forward on the scalar mean CE.
    logpt = -mean_ce
    pt = jnp.exp(logpt)
    return -((1.0 - pt) ** gamma) * alpha * logpt


def _focal_loss_2d_ref(preds, labels, *, alpha, gamma, weight, ignore_index):
    """Pure-JAX reference (same math, no Pallas) for a sanity check."""
    n, c, h, w = preds.shape
    x = jnp.transpose(preds, (0, 2, 3, 1)).reshape(-1, c).astype(jnp.float32)
    y = labels.reshape(-1).astype(jnp.int32)
    wts = (jnp.ones((c,), jnp.float32) if weight is None
           else jnp.asarray(weight, jnp.float32))
    logp = jax.nn.log_softmax(x, axis=-1)
    y_safe = jnp.where(y == ignore_index, 0, y)
    ce = -jnp.take_along_axis(logp, y_safe[:, None], axis=-1)[:, 0]
    wy = wts[y_safe]
    valid = (y != ignore_index).astype(jnp.float32)
    mean_ce = jnp.sum(valid * wy * ce) / jnp.sum(valid * wy)
    logpt = -mean_ce
    pt = jnp.exp(logpt)
    return -((1.0 - pt) ** gamma) * alpha * logpt


if __name__ == "__main__":
    key = jax.random.PRNGKey(0)
    k1, k2, k3 = jax.random.split(key, 3)

    N, C, H, W = 2, 4, 16, 16
    ignore_index = 255
    alpha, gamma = 0.5, 2.0

    preds = jax.random.normal(k1, (N, C, H, W), dtype=jnp.float32)
    labels = jax.random.randint(k2, (N, H, W), 0, C, dtype=jnp.int32)
    ignore_mask = jax.random.uniform(k3, (N, H, W)) < 0.1
    labels = jnp.where(ignore_mask, ignore_index, labels)

    # weight=None (module default).
    out = focal_loss_2d(preds, labels, alpha=alpha, gamma=gamma, weight=None,
                        ignore_index=ignore_index)
    jax.block_until_ready(out)
    ref = _focal_loss_2d_ref(preds, labels, alpha=alpha, gamma=gamma,
                             weight=None, ignore_index=ignore_index)
    assert jnp.allclose(out, ref, rtol=1e-4, atol=1e-5), (out, ref)

    # Per-class weight path.
    wvec = jnp.array([0.5, 1.0, 2.0, 1.5], jnp.float32)
    out_w = focal_loss_2d(preds, labels, alpha=alpha, gamma=gamma, weight=wvec,
                          ignore_index=ignore_index)
    jax.block_until_ready(out_w)
    ref_w = _focal_loss_2d_ref(preds, labels, alpha=alpha, gamma=gamma,
                               weight=wvec, ignore_index=ignore_index)
    assert jnp.allclose(out_w, ref_w, rtol=1e-4, atol=1e-5), (out_w, ref_w)

    print("KERNEL_OK")
</pallas_src>

<mosaic_0001>
module attributes {stable_mosaic.version = 11 : i64} {
  func.func @_weighted_ce_kernel(%arg0: i32, %arg1: i32, %arg2: memref<1x4x8x128xf32, #tpu.memory_space<vmem>>, %arg3: memref<1x1x8x128xi32, #tpu.memory_space<vmem>>, %arg4: memref<4xf32, #tpu.memory_space<smem>>, %arg5: memref<1x1x8x128xf32, #tpu.memory_space<vmem>>, %arg6: memref<1x1x8x128xf32, #tpu.memory_space<vmem>>) attributes {dimension_semantics = [#tpu.dimension_semantics<parallel>, #tpu.dimension_semantics<parallel>], iteration_bounds = array<i64: 2, 1>, scalar_prefetch = 0 : i64, scratch_operands = 0 : i64, tpu.core_type = #tpu.core_type<tc>, window_params = [{transform_indices = @transform_0, window_bounds = array<i64: 1, 4, 8, 128>}, {transform_indices = @transform_1, window_bounds = array<i64: 1, 1, 8, 128>}, {transform_indices = @transform_2, window_bounds = array<i64: 4>}, {transform_indices = @transform_3, window_bounds = array<i64: 1, 1, 8, 128>}, {transform_indices = @transform_4, window_bounds = array<i64: 1, 1, 8, 128>}]} {
    %c0 = arith.constant 0 : index
    %c0_0 = arith.constant 0 : index
    %c0_1 = arith.constant 0 : index
    %c0_2 = arith.constant 0 : index
    %0 = vector.load %arg3[%c0, %c0_0, %c0_1, %c0_2] : memref<1x1x8x128xi32, #tpu.memory_space<vmem>>, vector<1x1x8x128xi32>
    %1 = vector.shape_cast %0 : vector<1x1x8x128xi32> to vector<8x128xi32>
    %c0_3 = arith.constant 0 : index
    %c0_4 = arith.constant 0 : index
    %c0_5 = arith.constant 0 : index
    %c0_6 = arith.constant 0 : index
    %2 = vector.load %arg2[%c0_3, %c0_4, %c0_5, %c0_6] : memref<1x4x8x128xf32, #tpu.memory_space<vmem>>, vector<1x1x8x128xf32>
    %3 = vector.shape_cast %2 : vector<1x1x8x128xf32> to vector<8x128xf32>
    %c0_7 = arith.constant 0 : index
    %c1 = arith.constant 1 : index
    %c0_8 = arith.constant 0 : index
    %c0_9 = arith.constant 0 : index
    %4 = vector.load %arg2[%c0_7, %c1, %c0_8, %c0_9] : memref<1x4x8x128xf32, #tpu.memory_space<vmem>>, vector<1x1x8x128xf32>
    %5 = vector.shape_cast %4 : vector<1x1x8x128xf32> to vector<8x128xf32>
    %6 = arith.maximumf %3, %5 : vector<8x128xf32>
    %c0_10 = arith.constant 0 : index
    %c2 = arith.constant 2 : index
    %c0_11 = arith.constant 0 : index
    %c0_12 = arith.constant 0 : index
    %7 = vector.load %arg2[%c0_10, %c2, %c0_11, %c0_12] : memref<1x4x8x128xf32, #tpu.memory_space<vmem>>, vector<1x1x8x128xf32>
    %8 = vector.shape_cast %7 : vector<1x1x8x128xf32> to vector<8x128xf32>
    %9 = arith.maximumf %6, %8 : vector<8x128xf32>
    %c0_13 = arith.constant 0 : index
    %c3 = arith.constant 3 : index
    %c0_14 = arith.constant 0 : index
    %c0_15 = arith.constant 0 : index
    %10 = vector.load %arg2[%c0_13, %c3, %c0_14, %c0_15] : memref<1x4x8x128xf32, #tpu.memory_space<vmem>>, vector<1x1x8x128xf32>
    %11 = vector.shape_cast %10 : vector<1x1x8x128xf32> to vector<8x128xf32>
    %12 = arith.maximumf %9, %11 : vector<8x128xf32>
    %cst = arith.constant 0.000000e+00 : f32
    %13 = vector.broadcast %cst : f32 to vector<8x128xf32>
    %cst_16 = arith.constant 0.000000e+00 : f32
    %14 = vector.broadcast %cst_16 : f32 to vector<8x128xf32>
    %cst_17 = arith.constant 0.000000e+00 : f32
    %15 = vector.broadcast %cst_17 : f32 to vector<8x128xf32>
    %c0_18 = arith.constant 0 : index
    %c0_19 = arith.constant 0 : index
    %c0_20 = arith.constant 0 : index
    %c0_21 = arith.constant 0 : index
    %16 = vector.load %arg2[%c0_18, %c0_19, %c0_20, %c0_21] : memref<1x4x8x128xf32, #tpu.memory_space<vmem>>, vector<1x1x8x128xf32>
    %17 = vector.shape_cast %16 : vector<1x1x8x128xf32> to vector<8x128xf32>
    %18 = arith.subf %17, %12 : vector<8x128xf32>
    %19 = math.exp %18 : vector<8x128xf32>
    %20 = arith.addf %13, %19 : vector<8x128xf32>
    %c0_i32 = arith.constant 0 : i32
    %21 = vector.broadcast %c0_i32 : i32 to vector<8x128xi32>
    %22 = arith.cmpi eq, %1, %21 : vector<8x128xi32>
    %23 = arith.select %22, %17, %14 : vector<8x128xi1>, vector<8x128xf32>
    %c0_22 = arith.constant 0 : index
    %24 = memref.load %arg4[%c0_22] : memref<4xf32, #tpu.memory_space<smem>>
    %25 = vector.broadcast %24 : f32 to vector<8x128xf32>
    %26 = arith.select %22, %25, %15 : vector<8x128xi1>, vector<8x128xf32>
    %c0_23 = arith.constant 0 : index
    %c1_24 = arith.constant 1 : index
    %c0_25 = arith.constant 0 : index
    %c0_26 = arith.constant 0 : index
    %27 = vector.load %arg2[%c0_23, %c1_24, %c0_25, %c0_26] : memref<1x4x8x128xf32, #tpu.memory_space<vmem>>, vector<1x1x8x128xf32>
    %28 = vector.shape_cast %27 : vector<1x1x8x128xf32> to vector<8x128xf32>
    %29 = arith.subf %28, %12 : vector<8x128xf32>
    %30 = math.exp %29 : vector<8x128xf32>
    %31 = arith.addf %20, %30 : vector<8x128xf32>
    %c1_i32 = arith.constant 1 : i32
    %32 = vector.broadcast %c1_i32 : i32 to vector<8x128xi32>
    %33 = arith.cmpi eq, %1, %32 : vector<8x128xi32>
    %34 = arith.select %33, %28, %23 : vector<8x128xi1>, vector<8x128xf32>
    %c1_27 = arith.constant 1 : index
    %35 = memref.load %arg4[%c1_27] : memref<4xf32, #tpu.memory_space<smem>>
    %36 = vector.broadcast %35 : f32 to vector<8x128xf32>
    %37 = arith.select %33, %36, %26 : vector<8x128xi1>, vector<8x128xf32>
    %c0_28 = arith.constant 0 : index
    %c2_29 = arith.constant 2 : index
    %c0_30 = arith.constant 0 : index
    %c0_31 = arith.constant 0 : index
    %38 = vector.load %arg2[%c0_28, %c2_29, %c0_30, %c0_31] : memref<1x4x8x128xf32, #tpu.memory_space<vmem>>, vector<1x1x8x128xf32>
    %39 = vector.shape_cast %38 : vector<1x1x8x128xf32> to vector<8x128xf32>
    %40 = arith.subf %39, %12 : vector<8x128xf32>
    %41 = math.exp %40 : vector<8x128xf32>
    %42 = arith.addf %31, %41 : vector<8x128xf32>
    %c2_i32 = arith.constant 2 : i32
    %43 = vector.broadcast %c2_i32 : i32 to vector<8x128xi32>
    %44 = arith.cmpi eq, %1, %43 : vector<8x128xi32>
    %45 = arith.select %44, %39, %34 : vector<8x128xi1>, vector<8x128xf32>
    %c2_32 = arith.constant 2 : index
    %46 = memref.load %arg4[%c2_32] : memref<4xf32, #tpu.memory_space<smem>>
    %47 = vector.broadcast %46 : f32 to vector<8x128xf32>
    %48 = arith.select %44, %47, %37 : vector<8x128xi1>, vector<8x128xf32>
    %c0_33 = arith.constant 0 : index
    %c3_34 = arith.constant 3 : index
    %c0_35 = arith.constant 0 : index
    %c0_36 = arith.constant 0 : index
    %49 = vector.load %arg2[%c0_33, %c3_34, %c0_35, %c0_36] : memref<1x4x8x128xf32, #tpu.memory_space<vmem>>, vector<1x1x8x128xf32>
    %50 = vector.shape_cast %49 : vector<1x1x8x128xf32> to vector<8x128xf32>
    %51 = arith.subf %50, %12 : vector<8x128xf32>
    %52 = math.exp %51 : vector<8x128xf32>
    %53 = arith.addf %42, %52 : vector<8x128xf32>
    %c3_i32 = arith.constant 3 : i32
    %54 = vector.broadcast %c3_i32 : i32 to vector<8x128xi32>
    %55 = arith.cmpi eq, %1, %54 : vector<8x128xi32>
    %56 = arith.select %55, %50, %45 : vector<8x128xi1>, vector<8x128xf32>
    %c3_37 = arith.constant 3 : index
    %57 = memref.load %arg4[%c3_37] : memref<4xf32, #tpu.memory_space<smem>>
    %58 = vector.broadcast %57 : f32 to vector<8x128xf32>
    %59 = arith.select %55, %58, %48 : vector<8x128xi1>, vector<8x128xf32>
    %60 = math.log %53 : vector<8x128xf32>
    %61 = arith.addf %12, %60 : vector<8x128xf32>
    %62 = arith.subf %61, %56 : vector<8x128xf32>
    %c255_i32 = arith.constant 255 : i32
    %63 = vector.broadcast %c255_i32 : i32 to vector<8x128xi32>
    %64 = arith.cmpi ne, %1, %63 : vector<8x128xi32>
    %65 = arith.mulf %59, %62 : vector<8x128xf32>
    %cst_38 = arith.constant 0.000000e+00 : f32
    %66 = vector.broadcast %cst_38 : f32 to vector<8x128xf32>
    %67 = arith.select %64, %65, %66 : vector<8x128xi1>, vector<8x128xf32>
    %cst_39 = arith.constant 0.000000e+00 : f32
    %68 = vector.broadcast %cst_39 : f32 to vector<8x128xf32>
    %69 = arith.select %64, %59, %68 : vector<8x128xi1>, vector<8x128xf32>
    %70 = vector.shape_cast %67 : vector<8x128xf32> to vector<1x8x128xf32>
    %cst_40 = arith.constant dense<0.000000e+00> : vector<8x128xf32>
    %71 = vector.multi_reduction <add>, %70, %cst_40 [0] : vector<1x8x128xf32> to vector<8x128xf32>
    %c0_41 = arith.constant 0 : index
    %c0_42 = arith.constant 0 : index
    %c0_43 = arith.constant 0 : index
    %c0_44 = arith.constant 0 : index
    %72 = vector.load %arg5[%c0_41, %c0_42, %c0_43, %c0_44] : memref<1x1x8x128xf32, #tpu.memory_space<vmem>>, vector<1x1x8x128xf32>
    %73 = vector.shape_cast %72 : vector<1x1x8x128xf32> to vector<8x128xf32>
    %74 = vector.shape_cast %71 : vector<8x128xf32> to vector<1x1x8x128xf32>
    tpu.vector_store %arg5[%c0_41, %c0_42, %c0_43, %c0_44], %74 {strides = array<i32>} : memref<1x1x8x128xf32, #tpu.memory_space<vmem>>, vector<1x1x8x128xf32>,
    %75 = vector.shape_cast %69 : vector<8x128xf32> to vector<1x8x128xf32>
    %cst_45 = arith.constant dense<0.000000e+00> : vector<8x128xf32>
    %76 = vector.multi_reduction <add>, %75, %cst_45 [0] : vector<1x8x128xf32> to vector<8x128xf32>
    %c0_46 = arith.constant 0 : index
    %c0_47 = arith.constant 0 : index
    %c0_48 = arith.constant 0 : index
    %c0_49 = arith.constant 0 : index
    %77 = vector.load %arg6[%c0_46, %c0_47, %c0_48, %c0_49] : memref<1x1x8x128xf32, #tpu.memory_space<vmem>>, vector<1x1x8x128xf32>
    %78 = vector.shape_cast %77 : vector<1x1x8x128xf32> to vector<8x128xf32>
    %79 = vector.shape_cast %76 : vector<8x128xf32> to vector<1x1x8x128xf32>
    tpu.vector_store %arg6[%c0_46, %c0_47, %c0_48, %c0_49], %79 {strides = array<i32>} : memref<1x1x8x128xf32, #tpu.memory_space<vmem>>, vector<1x1x8x128xf32>,
    return
  }
  func.func @transform_0(%arg0: i32, %arg1: i32) -> (i32, i32, i32, i32) {
    %c0_i32 = arith.constant 0 : i32
    %c0_i32_0 = arith.constant 0 : i32
    %c0_i32_1 = arith.constant 0 : i32
    return %arg0, %c0_i32, %arg1, %c0_i32_0 : i32, i32, i32, i32
  }
  func.func @transform_1(%arg0: i32, %arg1: i32) -> (i32, i32, i32, i32) {
    %c0_i32 = arith.constant 0 : i32
    %c0_i32_0 = arith.constant 0 : i32
    %c0_i32_1 = arith.constant 0 : i32
    return %arg0, %c0_i32, %arg1, %c0_i32_0 : i32, i32, i32, i32
  }
  func.func @transform_2(%arg0: i32, %arg1: i32) -> i32 {
    %c0_i32 = arith.constant 0 : i32
    %c0_i32_0 = arith.constant 0 : i32
    return %c0_i32 : i32
  }
  func.func @transform_3(%arg0: i32, %arg1: i32) -> (i32, i32, i32, i32) {
    %c0_i32 = arith.constant 0 : i32
    %c0_i32_0 = arith.constant 0 : i32
    %c0_i32_1 = arith.constant 0 : i32
    return %arg0, %arg1, %c0_i32, %c0_i32_0 : i32, i32, i32, i32
  }
  func.func @transform_4(%arg0: i32, %arg1: i32) -> (i32, i32, i32, i32) {
    %c0_i32 = arith.constant 0 : i32
    %c0_i32_0 = arith.constant 0 : i32
    %c0_i32_1 = arith.constant 0 : i32
    return %arg0, %arg1, %c0_i32, %c0_i32_0 : i32, i32, i32, i32
  }
}

</mosaic_0001>

<llo_original>
// kernel: tpu_custom_call.1
$region0: #{tpu_custom_call.1}
  #allocation0 [shape = 'u32[]', space=smem, size = 0x4, offset = 0x4, fixed_abs, tag = 'smem constant byte address 0x4 - core index']
  #allocation1 [shape = 'u32[144,128]{1,0:T(1,128)}', space=vmem, size = 0x12000, scoped, tag = 'internal scratch']
  %s0 = inlined_call_operand.hbm [shape: f32[2,4,8,128], index: 0, kind: input, shape index: {}]
  %s1 = inlined_call_operand.hbm [shape: s32[2,1,8,128], index: 1, kind: input, shape index: {}]
  %s2 = inlined_call_operand.vmem [shape: f32[4], index: 2, kind: input, shape index: {}]
  %s3 = inlined_call_operand.hbm [shape: f32[2,1,8,128], index: 3, kind: output, shape index: {0}]
  %s4 = inlined_call_operand.hbm [shape: f32[2,1,8,128], index: 4, kind: output, shape index: {1}]
  %5 = xla_tuple %s3, %s4
  %s6 = sld [smem:[#allocation0]]
  $region65: #{tpu_custom_call.1} parent=0
    _
  %s8 = ssub.s32 1, %s6
  %s9 = scalar_select 0, %s8, %s6
  $region1: #{tpu_custom_call.1} parent=0
    #allocation2 [shape = 'u8[32768]{0}', space=vmem, size = 0x8000, scoped, tag = 'input window, operand 0']
    #allocation3 [shape = 's32[2]{0}', space=sflag, size = 0x8, scoped, tag = 'scoped memory for tpu_custom_call.1']
    #allocation4 [shape = 's32[2]{0}', space=sflag, size = 0x8, scoped, tag = 'scoped memory for tpu_custom_call.1']
    #allocation5 [shape = 's32[2]{0}', space=sflag, size = 0x8, scoped, tag = 'scoped memory for tpu_custom_call.1']
    #allocation6 [shape = 'u8[8192]{0}', space=vmem, size = 0x2000, scoped, tag = 'input window, operand 1']
    #allocation7 [shape = 's32[2]{0}', space=sflag, size = 0x8, scoped, tag = 'scoped memory for tpu_custom_call.1']
    #allocation8 [shape = 'u8[512]{0}', space=smem, size = 0x200, scoped, tag = 'input window, operand 2, single buffered']
    #allocation9 [shape = 'u8[8192]{0}', space=vmem, size = 0x2000, scoped, tag = 'output window, operand 0']
    #allocation10 [shape = 'u8[8192]{0}', space=vmem, size = 0x2000, scoped, tag = 'output window, operand 1']
    #allocation11 [shape = 's32[2]{0}', space=sflag, size = 0x8, scoped, tag = 'scoped memory for tpu_custom_call.1']
    %10 = vsyncpa [#allocation3], 0
    %s11 = scalar_lea.sflag [#allocation3], 1
    %12 = vsyncpa %s11, 0
    %13 = vsyncpa [#allocation7], 0
    %s14 = scalar_lea.sflag [#allocation7], 1
    %15 = vsyncpa %s14, 0
    %16 = vsyncpa [#allocation5], 0
    %17 = vsyncpa [#allocation4], 0
    %s18 = scalar_lea.sflag [#allocation4], 1
    %19 = vsyncpa %s18, 0
    %20 = vsyncpa [#allocation11], 0
    %s21 = scalar_lea.sflag [#allocation11], 1
    %22 = vsyncpa %s21, 0
    loop: start=0, step=1, limit=4
    $region2: #{tpu_custom_call.1} parent=1 // loop_pre_header
      _
    $region3: #{tpu_custom_call.1} parent=1 // loop_header
      %s24 = sphi 0, %s28
      %p25 = scmp.ge.s32.totalorder %s24, 4
      %s31 = sphi 0, %s43
      %s32 = sphi 0, %s39
      %s33 = sphi 0, %s31
      %s34 = sphi 0, %s32
      %s35 = sphi 0, %s33
      %s36 = sphi 0, %s34
      %s48 = sphi 0, %s50
      %s51 = sphi 0, %s48
      %s52 = sphi 0, %s51
      %s68 = sphi 0, %s52
      %s76 = sphi 0, %s78
      %s79 = sphi 0, %s76
      %s80 = sphi 0, %s79
      %s96 = sphi 0, %s80
      %s100 = sphi 0, %s100
      %s102 = sphi 0, %s100
      %s103 = sphi 0, %s102
      %s117 = sphi 0, %s103
      %s125 = sphi 0, %s127
      %s128 = sphi 0, %s125
      %s129 = sphi 0, %s128
      %s145 = sphi 0, %s129
      %s153 = sphi 0, %s155
      %s156 = sphi 0, %s153
      %s157 = sphi 0, %s156
      %s173 = sphi 0, %s157
    $region4: #{tpu_custom_call.1} parent=1 // loop_header_branch
      %27 = sbr.rel (%p25) target = $region8
    $region5: #{tpu_custom_call.1} parent=1 // loop_body
      %s29 = ssub.s32 %s24, 1
      %s30 = ssub.s32 %s24, 2
      %s37 = sadd.s32 1, %s32
      %p38 = scmp.ge.s32.totalorder %s37, 1
      %s39 = scalar_select %p38, 0, %s37
      %s40 = sadd.s32 1, %s31
      %s41 = scalar_select %p38, %s40, %s31
      %p42 = scmp.ge.s32.totalorder %s41, 2
      %s43 = scalar_select %p42, 0, %s41
      %s44 = ssub.s32 %s31, %s43
      %s45 = ssub.s32 %s32, %s39
      %s46 = sor.u32 %s44, %s45
      %p47 = scmp.eq.s32.totalorder %s46, 0
      %s49 = sadd.s32 %s48, 1
      %s50 = scalar_select %p47, %s48, %s49
      %p53 = pneg %p47
      %p54 = scmp.eq.s32.totalorder %s24, 1
      %p55 = por %p53, %p54
      %p56 = scmp.ne.s32.totalorder %s48, %s51
      %p57 = scmp.eq.s32.totalorder %s24, 0
      %p58 = por %p56, %p57
      %p59 = scmp.ne.s32.totalorder %s48, %s51
      %p60 = scmp.eq.s32.totalorder %s29, 1
      %p61 = por %p59, %p60
      %p62 = scmp.ne.s32.totalorder %s51, %s52
      %p63 = scmp.eq.s32.totalorder %s29, 0
      %p64 = por %p62, %p63
      %p65 = scmp.ne.s32.totalorder %s51, %s52
      %p66 = scmp.eq.s32.totalorder %s30, 1
      %p67 = por %p65, %p66
      %p69 = scmp.ne.s32.totalorder %s52, %s68
      %p70 = scmp.eq.s32.totalorder %s30, 0
      %p71 = por %p69, %p70
      %s72 = ssub.s32 %s31, %s43
      %s73 = ssub.s32 %s32, %s39
      %s74 = sor.u32 %s72, %s73
      %p75 = scmp.eq.s32.totalorder %s74, 0
      %s77 = sadd.s32 %s76, 1
      %s78 = scalar_select %p75, %s76, %s77
      %p81 = pneg %p75
      %p82 = scmp.eq.s32.totalorder %s24, 1
      %p83 = por %p81, %p82
      %p84 = scmp.ne.s32.totalorder %s76, %s79
      %p85 = scmp.eq.s32.totalorder %s24, 0
      %p86 = por %p84, %p85
      %p87 = scmp.ne.s32.totalorder %s76, %s79
      %p88 = scmp.eq.s32.totalorder %s29, 1
      %p89 = por %p87, %p88
      %p90 = scmp.ne.s32.totalorder %s79, %s80
      %p91 = scmp.eq.s32.totalorder %s29, 0
      %p92 = por %p90, %p91
      %p93 = scmp.ne.s32.totalorder %s79, %s80
      %p94 = scmp.eq.s32.totalorder %s30, 1
      %p95 = por %p93, %p94
      %p97 = scmp.ne.s32.totalorder %s80, %s96
      %p98 = scmp.eq.s32.totalorder %s30, 0
      %p99 = por %p97, %p98
      %s101 = sadd.s32 %s100, 1
      %p104 = scmp.eq.s32.totalorder %s24, 1
      %p105 = scmp.ne.s32.totalorder %s100, %s102
      %p106 = scmp.eq.s32.totalorder %s24, 0
      %p107 = por %p105, %p106
      %p108 = scmp.ne.s32.totalorder %s100, %s102
      %p109 = scmp.eq.s32.totalorder %s29, 1
      %p110 = por %p108, %p109
      %p111 = scmp.ne.s32.totalorder %s102, %s103
      %p112 = scmp.eq.s32.totalorder %s29, 0
      %p113 = por %p111, %p112
      %p114 = scmp.ne.s32.totalorder %s102, %s103
      %p115 = scmp.eq.s32.totalorder %s30, 1
      %p116 = por %p114, %p115
      %p118 = scmp.ne.s32.totalorder %s103, %s117
      %p119 = scmp.eq.s32.totalorder %s30, 0
      %p120 = por %p118, %p119
      %s121 = ssub.s32 %s31, %s43
      %s122 = ssub.s32 %s32, %s39
      %s123 = sor.u32 %s121, %s122
      %p124 = scmp.eq.s32.totalorder %s123, 0
      %s126 = sadd.s32 %s125, 1
      %s127 = scalar_select %p124, %s125, %s126
      %p130 = pneg %p124
      %p131 = scmp.eq.s32.totalorder %s24, 1
      %p132 = por %p130, %p131
      %p133 = scmp.ne.s32.totalorder %s125, %s128
      %p134 = scmp.eq.s32.totalorder %s24, 0
      %p135 = por %p133, %p134
      %p136 = scmp.ne.s32.totalorder %s125, %s128
      %p137 = scmp.eq.s32.totalorder %s29, 1
      %p138 = por %p136, %p137
      %p139 = scmp.ne.s32.totalorder %s128, %s129
      %p140 = scmp.eq.s32.totalorder %s29, 0
      %p141 = por %p139, %p140
      %p142 = scmp.ne.s32.totalorder %s128, %s129
      %p143 = scmp.eq.s32.totalorder %s30, 1
      %p144 = por %p142, %p143
      %p146 = scmp.ne.s32.totalorder %s129, %s145
      %p147 = scmp.eq.s32.totalorder %s30, 0
      %p148 = por %p146, %p147
      %s149 = ssub.s32 %s31, %s43
      %s150 = ssub.s32 %s32, %s39
      %s151 = sor.u32 %s149, %s150
      %p152 = scmp.eq.s32.totalorder %s151, 0
      %s154 = sadd.s32 %s153, 1
      %s155 = scalar_select %p152, %s153, %s154
      %p158 = pneg %p152
      %p159 = scmp.eq.s32.totalorder %s24, 1
      %p160 = por %p158, %p159
      %p161 = scmp.ne.s32.totalorder %s153, %s156
      %p162 = scmp.eq.s32.totalorder %s24, 0
      %p163 = por %p161, %p162
      %p164 = scmp.ne.s32.totalorder %s153, %s156
      %p165 = scmp.eq.s32.totalorder %s29, 1
      %p166 = por %p164, %p165
      %p167 = scmp.ne.s32.totalorder %s156, %s157
      %p168 = scmp.eq.s32.totalorder %s29, 0
      %p169 = por %p167, %p168
      %p170 = scmp.ne.s32.totalorder %s156, %s157
      %p171 = scmp.eq.s32.totalorder %s30, 1
      %p172 = por %p170, %p171
      %p174 = scmp.ne.s32.totalorder %s157, %s173
      %p175 = scmp.eq.s32.totalorder %s30, 0
      %p176 = por %p174, %p175
      %p177 = scmp.le.s32.totalorder 1, %s24
      %p178 = scmp.lt.s32.totalorder %s24, 3
      %p179 = pnand %p177, %p178
      %p180 = pneg %p179
      // Predicated region
      $region9: #{tpu_custom_call.1} parent=5 // pred_check
        _
      $region10: #{tpu_custom_call.1} parent=5 // pred_check_branch
        %182 = sbr.rel (%p179) target = $region12
      $region11: #{tpu_custom_call.1} parent=5 // pred_region
        %s183 = ssub.s32 %s24, 1
        // Predicated region
        $region13: #{tpu_custom_call.1} parent=11 // pred_check
          %p184 = pneg %p113
        $region14: #{tpu_custom_call.1} parent=11 // pred_check_branch
          %186 = sbr.rel (%p184) target = $region16
        $region15: #{tpu_custom_call.1} parent=11 // pred_region
          %s188 = ssub.s32 16, 16
          %189 = vsyncadd [#allocation5], %s188
          %s191 = sshll.u32 %s2, 4
          %s192 = int_to_ptr.vmem [resolvable:$true] %s191
          %194 = dma.vmem_to_smem %s192, 16, [#allocation8], [#allocation5]
        $region16: #{tpu_custom_call.1} parent=11 // pred_fallthru
          _
      $region12: #{tpu_custom_call.1} parent=5 // pred_fallthru
        _
      %p195 = scmp.lt.s32.totalorder %s24, 2
      // Predicated region
      $region17: #{tpu_custom_call.1} parent=5 // pred_check
        %p196 = pneg %p195
      $region18: #{tpu_custom_call.1} parent=5 // pred_check_branch
        %198 = sbr.rel (%p196) target = $region20
      $region19: #{tpu_custom_call.1} parent=5 // pred_region
        // Predicated region
        $region21: #{tpu_custom_call.1} parent=19 // pred_check
          %p199 = pneg %p58
        $region22: #{tpu_custom_call.1} parent=19 // pred_check_branch
          %201 = sbr.rel (%p199) target = $region24
        $region23: #{tpu_custom_call.1} parent=19 // pred_region
          %s202 = sand.u32 %s48, 1
          %s203 = scalar_lea.sflag [#allocation3], %s202
          %s204 = sand.u32 %s48, 1
          %s205 = smul.addr %s204, 32
          %s206 = scalar_lea.vmem [#allocation2], %s205
          %s208 = ssub.s32 512, 512
          %209 = vsyncadd %s203, %s208
          %s210 = smul.addr %s31, 4
          %s211 = sadd.s32 %s32, %s210
          %s212 = smul.addr %s211, 128
          %s213 = scalar_lea.hbm %s0, %s212
          %s214 = sshll.u32 %s206, 4
          %s215 = int_to_ptr.vmem [resolvable:$true] %s214
          %220 = dma.hbm_to_vmem [thread:$0]  %s213, 512, %s215, %s203, 128, 128, 8
        $region24: #{tpu_custom_call.1} parent=19 // pred_fallthru
          _
        // Predicated region
        $region25: #{tpu_custom_call.1} parent=19 // pred_check
          %p221 = pneg %p86
        $region26: #{tpu_custom_call.1} parent=19 // pred_check_branch
          %223 = sbr.rel (%p221) target = $region28
        $region27: #{tpu_custom_call.1} parent=19 // pred_region
          %s224 = sand.u32 %s76, 1
          %s225 = scalar_lea.sflag [#allocation7], %s224
          %s226 = sand.u32 %s76, 1
          %s227 = smul.addr %s226, 8
          %s228 = scalar_lea.vmem [#allocation6], %s227
          %s230 = ssub.s32 128, 128
          %231 = vsyncadd %s225, %s230
          %s232 = sadd.s32 %s32, %s31
          %s233 = smul.addr %s232, 128
          %s234 = scalar_lea.hbm %s1, %s233
          %s236 = sshll.u32 %s228, 4
          %s237 = int_to_ptr.vmem [resolvable:$true] %s236
          %239 = dma.hbm_to_vmem [thread:$0]  %s234, 128, %s237, %s225
        $region28: #{tpu_custom_call.1} parent=19 // pred_fallthru
          _
      $region20: #{tpu_custom_call.1} parent=5 // pred_fallthru
        _
      %p240 = scmp.le.s32.totalorder 1, %s24
      %p241 = scmp.lt.s32.totalorder %s24, 3
      %p242 = pnand %p240, %p241
      %p243 = pneg %p242
      // Predicated region
      $region29: #{tpu_custom_call.1} parent=5 // pred_check
        _
      $region30: #{tpu_custom_call.1} parent=5 // pred_check_branch
        %245 = sbr.rel (%p242) target = $region32
      $region31: #{tpu_custom_call.1} parent=5 // pred_region
        %s246 = ssub.s32 %s24, 1
        %s247 = sand.u32 %s51, 1
        %s248 = scalar_lea.sflag [#allocation3], %s247
        %s249 = sand.u32 %s51, 1
        %s250 = smul.addr %s249, 32
        %s251 = scalar_lea.vmem [#allocation2], %s250
        // Predicated region
        $region33: #{tpu_custom_call.1} parent=31 // pred_check
          %p252 = pneg %p64
        $region34: #{tpu_custom_call.1} parent=31 // pred_check_branch
          %254 = sbr.rel (%p252) target = $region36
        $region35: #{tpu_custom_call.1} parent=31 // pred_region
          %255 = dma.done %s248, 512
        $region36: #{tpu_custom_call.1} parent=31 // pred_fallthru
          _
        %s256 = sand.u32 %s79, 1
        %s257 = scalar_lea.sflag [#allocation7], %s256
        %s258 = sand.u32 %s79, 1
        %s259 = smul.addr %s258, 8
        %s260 = scalar_lea.vmem [#allocation6], %s259
        // Predicated region
        $region37: #{tpu_custom_call.1} parent=31 // pred_check
          %p261 = pneg %p92
        $region38: #{tpu_custom_call.1} parent=31 // pred_check_branch
          %263 = sbr.rel (%p261) target = $region40
        $region39: #{tpu_custom_call.1} parent=31 // pred_region
          %264 = dma.done %s257, 128
        $region40: #{tpu_custom_call.1} parent=31 // pred_fallthru
          _
        // Predicated region
        $region41: #{tpu_custom_call.1} parent=31 // pred_check
          %p265 = pneg %p113
        $region42: #{tpu_custom_call.1} parent=31 // pred_check_branch
          %267 = sbr.rel (%p265) target = $region44
        $region43: #{tpu_custom_call.1} parent=31 // pred_region
          %268 = dma.done [#allocation5], 16
        $region44: #{tpu_custom_call.1} parent=31 // pred_fallthru
          _
        %269 = sfence
        %s270 = sand.u32 %s51, 1
        %s271 = scalar_lea.sflag [#allocation3], %s270
        %s272 = sand.u32 %s51, 1
        %s273 = smul.addr %s272, 32
        %s274 = scalar_lea.vmem [#allocation2], %s273
        %p275 = pneg %p64
        %p276 = pneg %p61
        %s277 = sand.u32 %s79, 1
        %s278 = scalar_lea.sflag [#allocation7], %s277
        %s279 = sand.u32 %s79, 1
        %s280 = smul.addr %s279, 8
        %s281 = scalar_lea.vmem [#allocation6], %s280
        %p282 = pneg %p92
        %p283 = pneg %p89
        %p284 = pneg %p113
        %p285 = pneg %p110
        %p286 = pneg %p141
        %p287 = pneg %p138
        %s288 = sand.u32 %s128, 1
        %s289 = scalar_lea.sflag [#allocation4], %s288
        %s290 = sand.u32 %s128, 1
        %s291 = smul.addr %s290, 8
        %s292 = scalar_lea.vmem [#allocation9], %s291
        %p293 = pneg %p169
        %p294 = pneg %p166
        %s295 = sand.u32 %s156, 1
        %s296 = scalar_lea.sflag [#allocation11], %s295
        %s297 = sand.u32 %s156, 1
        %s298 = smul.addr %s297, 8
        %s299 = scalar_lea.vmem [#allocation10], %s298
        %v300 = vld [vmem:[%s260] sm:$0xff]
        %v301 = vld [vmem:[%s251] sm:$0xff]
        %s302 = scalar_lea.vmem %s251, 8 [#allocation2]
        %v303 = vld [vmem:[%s302] sm:$0xff]
        %v304 = vmax.f32 %v301, %v303
        %s305 = scalar_lea.vmem %s251, 16 [#allocation2]
        %v306 = vld [vmem:[%s305] sm:$0xff]
        %v307 = vmax.f32 %v304, %v306
        %s308 = scalar_lea.vmem %s251, 24 [#allocation2]
        %v309 = vld [vmem:[%s308] sm:$0xff]
        %v310 = vmax.f32 %v307, %v309
        %v311 = vsub.f32 %v301, %v310
        %v312 = vmul.f32 %v311, 1.442695
        %v313 = vpow.pop %v312
        %v314 = vadd.f32 %v313, 0.0
        %vm315 = vcmp.eq.s32.totalorder %v300, 0
        %v316 = vsel %vm315, %v301, 0.0
        %s317 = sld [smem:[#allocation8]]
        %v318 = vstv %s317
        %v319 = vsel %vm315, %v318, 0.0
        %v320 = vsub.f32 %v303, %v310
        %v321 = vmul.f32 %v320, 1.442695
        %v322 = vpow.pop %v321
        %v323 = vadd.f32 %v314, %v322
        %vm324 = vcmp.eq.s32.totalorder %v300, 1
        %v325 = vsel %vm324, %v303, %v316
        %s326 = sld [smem:[#allocation8 + $0x1]]
        %v327 = vstv %s326
        %v328 = vsel %vm324, %v327, %v319
        %v329 = vsub.f32 %v306, %v310
        %v330 = vmul.f32 %v329, 1.442695
        %v331 = vpow.pop %v330
        %v332 = vadd.f32 %v323, %v331
        %vm333 = vcmp.eq.s32.totalorder %v300, 2
        %v334 = vsel %vm333, %v306, %v325
        %s335 = sld [smem:[#allocation8 + $0x2]]
        %v336 = vstv %s335
        %v337 = vsel %vm333, %v336, %v328
        %v338 = vsub.f32 %v309, %v310
        %v339 = vmul.f32 %v338, 1.442695
        %v340 = vpow.pop %v339
        %v341 = vadd.f32 %v332, %v340
        %vm342 = vcmp.eq.s32.totalorder %v300, 3
        %v343 = vsel %vm342, %v309, %v334
        %s344 = sld [smem:[#allocation8 + $0x3]]
        %v345 = vstv %s344
        %v346 = vsel %vm342, %v345, %v337
        %v347 = vlog2.pop %v341
        %v348 = vmul.f32 %v347, 0.6931472
        %v349 = vadd.f32 %v310, %v348
        %v350 = vsub.f32 %v349, %v343
        %vm351 = vcmp.ne.s32.totalorder %v300, 255
        %v352 = vmul.f32 %v346, %v350
        %v353 = vsel %vm351, %v352, 0.0
        %v354 = vsel %vm351, %v346, 0.0
        %v355 = vadd.f32 %v353, 0.0
        %356 = vst [vmem:[%s292] sm:$0xff] %v355
        %v357 = vadd.f32 %v354, 0.0
        %358 = vst [vmem:[%s299] sm:$0xff] %v357
        %s359 = sand.u32 %s128, 1
        %s360 = scalar_lea.sflag [#allocation4], %s359
        %s361 = sand.u32 %s128, 1
        %s362 = smul.addr %s361, 8
        %s363 = scalar_lea.vmem [#allocation9], %s362
        %s364 = sand.u32 %s156, 1
        %s365 = scalar_lea.sflag [#allocation11], %s364
        %s366 = sand.u32 %s156, 1
        %s367 = smul.addr %s366, 8
        %s368 = scalar_lea.vmem [#allocation10], %s367
        // Predicated region
        $region45: #{tpu_custom_call.1} parent=31 // pred_check
          %p369 = pneg %p138
        $region46: #{tpu_custom_call.1} parent=31 // pred_check_branch
          %371 = sbr.rel (%p369) target = $region48
        $region47: #{tpu_custom_call.1} parent=31 // pred_region
          %s373 = ssub.s32 128, 128
          %374 = vsyncadd %s360, %s373
          %s375 = sadd.s32 %s34, %s33
          %s376 = smul.addr %s375, 128
          %s377 = scalar_lea.hbm %s3, %s376
          %s379 = sshll.u32 %s363, 4
          %s380 = int_to_ptr.vmem [resolvable:$true] %s379
          %382 = dma.vmem_to_hbm [thread:$0]  %s380, 128, %s377, %s360
        $region48: #{tpu_custom_call.1} parent=31 // pred_fallthru
          _
        // Predicated region
        $region49: #{tpu_custom_call.1} parent=31 // pred_check
          %p383 = pneg %p166
        $region50: #{tpu_custom_call.1} parent=31 // pred_check_branch
          %385 = sbr.rel (%p383) target = $region52
        $region51: #{tpu_custom_call.1} parent=31 // pred_region
          %s387 = ssub.s32 128, 128
          %388 = vsyncadd %s365, %s387
          %s389 = sadd.s32 %s34, %s33
          %s390 = smul.addr %s389, 128
          %s391 = scalar_lea.hbm %s4, %s390
          %s393 = sshll.u32 %s368, 4
          %s394 = int_to_ptr.vmem [resolvable:$true] %s393
          %396 = dma.vmem_to_hbm [thread:$0]  %s394, 128, %s391, %s365
        $region52: #{tpu_custom_call.1} parent=31 // pred_fallthru
          _
      $region32: #{tpu_custom_call.1} parent=5 // pred_fallthru
        _
      %p397 = scmp.le.s32.totalorder 2, %s24
      // Predicated region
      $region53: #{tpu_custom_call.1} parent=5 // pred_check
        %p398 = pneg %p397
      $region54: #{tpu_custom_call.1} parent=5 // pred_check_branch
        %400 = sbr.rel (%p398) target = $region56
      $region55: #{tpu_custom_call.1} parent=5 // pred_region
        %s401 = ssub.s32 %s24, 2
        // Predicated region
        $region57: #{tpu_custom_call.1} parent=55 // pred_check
          %p402 = pneg %p144
        $region58: #{tpu_custom_call.1} parent=55 // pred_check_branch
          %404 = sbr.rel (%p402) target = $region60
        $region59: #{tpu_custom_call.1} parent=55 // pred_region
          %s405 = sand.u32 %s129, 1
          %s406 = scalar_lea.sflag [#allocation4], %s405
          %s407 = sand.u32 %s129, 1
          %s408 = smul.addr %s407, 8
          %s409 = scalar_lea.vmem [#allocation9], %s408
          %410 = dma.done %s406, 128
        $region60: #{tpu_custom_call.1} parent=55 // pred_fallthru
          _
        // Predicated region
        $region61: #{tpu_custom_call.1} parent=55 // pred_check
          %p411 = pneg %p172
        $region62: #{tpu_custom_call.1} parent=55 // pred_check_branch
          %413 = sbr.rel (%p411) target = $region64
        $region63: #{tpu_custom_call.1} parent=55 // pred_region
          %s414 = sand.u32 %s157, 1
          %s415 = scalar_lea.sflag [#allocation11], %s414
          %s416 = sand.u32 %s157, 1
          %s417 = smul.addr %s416, 8
          %s418 = scalar_lea.vmem [#allocation10], %s417
          %419 = dma.done %s415, 128
        $region64: #{tpu_custom_call.1} parent=55 // pred_fallthru
          _
      $region56: #{tpu_custom_call.1} parent=5 // pred_fallthru
        _
    $region6: #{tpu_custom_call.1} parent=1 // loop_footer
      %s28 = sadd.s32 1, %s24
    $region7: #{tpu_custom_call.1} parent=1 // loop_footer_branch
      %23 = sbr.rel target = $region3
    $region8: #{tpu_custom_call.1} parent=1 // loop_exit
      _
    %420 = vsyncpa [#allocation3], 1
    %s421 = scalar_lea.sflag [#allocation3], 1
    %422 = vsyncpa %s421, 1
    %423 = vsyncpa [#allocation7], 1
    %s424 = scalar_lea.sflag [#allocation7], 1
    %425 = vsyncpa %s424, 1
    %426 = vsyncpa [#allocation4], 1
    %s427 = scalar_lea.sflag [#allocation4], 1
    %428 = vsyncpa %s427, 1
    %429 = vsyncpa [#allocation11], 1
    %s430 = scalar_lea.sflag [#allocation11], 1
    %431 = vsyncpa %s430, 1
    %432 = vsyncpa [#allocation5], 1
    %s433 = scalar_lea.sflag [#allocation5], 1
    %434 = vsyncpa %s433, 1

</llo_original>
